<compile_context>
chip_gen: v6e
topology: v6e:2x2x1
jax: 0.10.0
libtpu: 0.0.40
codegen_flags: <defaults>
</compile_context>

<pallas_src>
import functools

import jax
import jax.numpy as jnp
from jax.experimental import pallas as pl
from jax.experimental.pallas import tpu as pltpu

D = 4                                  # feature width (Linear(4,4))
LANES = 128
SAMPLES_PER_ROW = LANES // D           # 32 samples per 128-lane row
BN_EPS = 1e-5                          # torch BatchNorm1d default
FUSED_MAX_BATCH = 1 << 16              # <= 64K samples -> single fused VMEM-resident call
TILE_ROWS = 4096                       # 2 MiB f32 tiles for the tiled fallback


# ----------------------------------------------------------------------------------
# One-time self-check of the lane-rotation direction so the mix is built for the
# convention the backend actually implements (np.roll-like vs. reversed).
# ----------------------------------------------------------------------------------
def _detect_roll_convention():
    """True iff pltpu.roll follows np.roll semantics (data moves to higher lanes)."""
    try:
        def probe(o_ref):
            v = jax.lax.broadcasted_iota(jnp.int32, (8, LANES), 1)
            o_ref[...] = pltpu.roll(v, 1, 1)
        r = pl.pallas_call(
            probe, out_shape=jax.ShapeDtypeStruct((8, LANES), jnp.int32))()
        return bool(r[0, 1] == 0)
    except Exception:                   # pragma: no cover - be permissive, assume np.roll
        return True


_ROLL_NP_CONVENTION = _detect_roll_convention()


# ----------------------------------------------------------------------------------
# Interleaved-lane helpers (lane l of a (rows,128) view = sample l//4, feature l%4)
# ----------------------------------------------------------------------------------
def _mix_coeffs(w):
    """Host-side lane-periodic coefficients for a 4x4 mix in interleaved layout.

    Row (d + 3) holds, at lane l (p = l % 4):  w[p, p + d] if 0 <= p + d < 4 else 0.
    In-kernel:  out[:, l] = sum_d coeffs[d+3, l] * v[:, l + d]  ==  (w @ sample)[p].
    Zero coefficients also mask the (irrelevant) wrapped lanes of each roll.
    """
    w = w.astype(jnp.float32)
    p = jnp.arange(LANES) % D
    rows = []
    for d in range(-(D - 1), D):
        k = p + d
        valid = (k >= 0) & (k < D)
        rows.append(jnp.where(valid, w[p, jnp.clip(k, 0, D - 1)], 0.0))
    return jnp.stack(rows)                                  # (7, 128) float32


def _lane_bias(b):
    """(4,) per-feature bias -> (1,128) lane-periodic bias vector."""
    return jnp.tile(b.astype(jnp.float32), SAMPLES_PER_ROW).reshape(1, LANES)


def _shift_lanes(v, d):
    """s with s[:, l] = v[:, l + d].  Wrapped lanes are masked by zero coefficients."""
    if d == 0:
        return v
    shift = (-d) % LANES if _ROLL_NP_CONVENTION else d % LANES
    return pltpu.roll(v, shift, 1)


def _mix4(v, coef):
    """Per-sample 4x4 feature mix: lane rolls (XLU) + VPU FMAs, MXU not used."""
    out = coef[D - 1:D, :] * v                               # d = 0 term
    for d in range(-(D - 1), D):
        if d == 0:
            continue
        out = out + coef[d + D - 1:d + D, :] * _shift_lanes(v, d)
    return out


def _lane_fold4(v):
    """(1,128) -> (1,128): every lane = sum over all lanes of the same feature class."""
    acc = v
    for s in (4, 8, 16, 32, 64):                             # direction-independent
        acc = acc + pltpu.roll(acc, s, 1)
    return acc


def _sample_mask(n_rows, row0, n_valid):
    """(n_rows,128) bool mask of lanes belonging to a real (non-padded) sample."""
    r = jax.lax.broadcasted_iota(jnp.int32, (n_rows, LANES), 0) + row0
    l = jax.lax.broadcasted_iota(jnp.int32, (n_rows, LANES), 1)
    return (r * LANES + l) < (D * n_valid)


# ----------------------------------------------------------------------------------
# Kernels
# ----------------------------------------------------------------------------------
def _fused_kernel(x_ref, c1_ref, c2_ref, b2_ref, o_ref, *, n_valid):
    """Single-call path: whole (R,128) view resident in VMEM; x read once, out written once.

    linear1 -> training-mode BatchNorm1d -> linear2, with gamma folded into W2,
    (W2@beta + b2) folded into the output bias, and b1 dropped (cancels against the
    batch mean).  Stats are centered (mean removed before squaring).
    """
    x = x_ref[...].astype(jnp.float32)                       # (R, 128) lane-dense
    c1 = c1_ref[...]
    c2 = c2_ref[...]
    bvec = b2_ref[...]
    inv_n = jnp.float32(1.0 / n_valid)

    mask = _sample_mask(x.shape[0], 0, n_valid)
    x = jnp.where(mask, x, 0.0)

    # per-feature batch mean of x (lane-periodic), then center
    mean_vec = _lane_fold4(jnp.sum(x, axis=0, keepdims=True)) * inv_n
    xc = jnp.where(mask, x - mean_vec, 0.0)

    # h - mean_h = W1 @ (x - mean_x)
    hc = _mix4(xc, c1)

    # biased batch variance per feature, rsqrt on the EUP
    var_vec = _lane_fold4(jnp.sum(hc * hc, axis=0, keepdims=True)) * inv_n
    rstd_vec = jax.lax.rsqrt(var_vec + BN_EPS)

    # linear2(gamma * hc * rstd + beta) = mix(hc * rstd, W2*gamma) + (W2@beta + b2)
    y = _mix4(hc * rstd_vec, c2) + bvec
    o_ref[...] = y.astype(o_ref.dtype)


def _stats_kernel(x_ref, c1_ref, sg_ref, sg2_ref, *, n_valid):
    """Tiled pass 1: accumulate per-feature sum / sum-of-squares of g = W1 @ x.

    (1,128) lane-periodic accumulators stay resident across the 'arbitrary' batch axis.
    b1 is dropped (cancels in training-mode BN).  Note: uses E[g^2] - mean^2; fine in
    f32 for realistic batch sizes and zero-mean-ish data.
    """
    i = pl.program_id(0)

    @pl.when(i == 0)
    def _init():
        sg_ref[...] = jnp.zeros_like(sg_ref)
        sg2_ref[...] = jnp.zeros_like(sg2_ref)

    x = x_ref[...].astype(jnp.float32)
    mask = _sample_mask(x.shape[0], i * x.shape[0], n_valid)  # also kills padded edge rows
    x = jnp.where(mask, x, 0.0)

    g = _mix4(x, c1_ref[...])
    sg_ref[...] += _lane_fold4(jnp.sum(g, axis=0, keepdims=True))
    sg2_ref[...] += _lane_fold4(jnp.sum(g * g, axis=0, keepdims=True))


def _apply_kernel(x_ref, c_ref, b_ref, o_ref):
    """Tiled pass 2: ONE effective 4x4 affine (BN + both linears pre-folded)."""
    y = _mix4(x_ref[...].astype(jnp.float32), c_ref[...]) + b_ref[...]
    o_ref[...] = y.astype(o_ref.dtype)


# ----------------------------------------------------------------------------------
# Wrapper
# ----------------------------------------------------------------------------------
def model_forward(x, params, force_tiled=False):
    """x: (B, 4).  params: dict with w1,b1,gamma,beta,w2,b2 in PyTorch layouts."""
    if x.ndim != 2 or x.shape[1] != D:
        raise ValueError(f"expected (B, {D}) input, got {x.shape}")
    B = x.shape[0]
    out_dtype = x.dtype

    w1 = params["w1"].astype(jnp.float32)                    # (out,in): h = W1 @ x + b1
    gamma = params["gamma"].reshape(D).astype(jnp.float32)
    beta = params["beta"].reshape(D).astype(jnp.float32)
    w2 = params["w2"].astype(jnp.float32)
    b2 = params["b2"].reshape(D).astype(jnp.float32)
    # params["b1"] intentionally unused: training-mode BN subtracts the batch mean, so a
    # constant bias after linear1 never reaches the output.
    # TODO(synk): eval-mode BatchNorm (running stats) would need b1 and a different folding.

    # Interleaved lane-dense view: (B,4) row-major == (R,128) row-major (free bitcast,
    # NOT a transpose).  Lane l holds sample l//4, feature l%4.
    pad = (-B) % SAMPLES_PER_ROW
    xp = x if pad == 0 else jnp.pad(x, ((0, pad), (0, 0)))
    R = (B + pad) // SAMPLES_PER_ROW
    xv = xp.reshape(R, LANES)

    if not force_tiled and B <= FUSED_MAX_BATCH:
        # ---- fused single-call path (one HBM read of x, one HBM write of out) ----
        c1 = _mix_coeffs(w1)
        c2 = _mix_coeffs(w2 * gamma[None, :])
        bvec = _lane_bias(w2 @ beta + b2)
        outv = pl.pallas_call(
            functools.partial(_fused_kernel, n_valid=B),
            out_shape=jax.ShapeDtypeStruct((R, LANES), out_dtype),
            compiler_params=pltpu.CompilerParams(vmem_limit_bytes=32 * 1024 * 1024),
        )(xv, c1, c2, bvec)
    else:
        # ---- large-B fallback: 2 MiB lane-dense tiles ----
        tile_rows = min(TILE_ROWS, R)
        grid = (pl.cdiv(R, tile_rows),)
        x_spec = pl.BlockSpec((tile_rows, LANES), lambda i: (i, 0))
        rep = lambda shape: pl.BlockSpec(shape, lambda i: (0, 0))
        vmem_cap = 48 * 1024 * 1024                         # valid on v5e/v6e/v7x

        c1 = _mix_coeffs(w1)
        sg, sg2 = pl.pallas_call(
            functools.partial(_stats_kernel, n_valid=B),
            out_shape=(jax.ShapeDtypeStruct((1, LANES), jnp.float32),
                       jax.ShapeDtypeStruct((1, LANES), jnp.float32)),
            grid=grid,
            in_specs=[x_spec, rep((2 * D - 1, LANES))],
            out_specs=(rep((1, LANES)), rep((1, LANES))),
            compiler_params=pltpu.CompilerParams(
                dimension_semantics=("arbitrary",), vmem_limit_bytes=vmem_cap),
        )(xv, c1)

        # tiny finalize: fold BN + linear1 + linear2 into ONE effective 4x4 affine
        mean_g = sg[0, :D] / B
        var_g = jnp.maximum(sg2[0, :D] / B - mean_g * mean_g, 0.0)
        scale = gamma * jax.lax.rsqrt(var_g + BN_EPS)        # gamma * rstd, (4,)
        w2s = w2 * scale[None, :]
        w_eff = w2s @ w1                                     # (4,4)
        b_eff = w2 @ beta + b2 - w2s @ mean_g                # (4,)

        outv = pl.pallas_call(
            _apply_kernel,
            out_shape=jax.ShapeDtypeStruct((R, LANES), out_dtype),
            grid=grid,
            in_specs=[x_spec, rep((2 * D - 1, LANES)), rep((1, LANES))],
            out_specs=x_spec,
            compiler_params=pltpu.CompilerParams(
                dimension_semantics=("parallel",),           # megacore-shardable on v7x
                vmem_limit_bytes=vmem_cap),
        )(xv, _mix_coeffs(w_eff), _lane_bias(b_eff))

    out = outv.reshape(R * SAMPLES_PER_ROW, D)
    return out if pad == 0 else out[:B]


# ----------------------------------------------------------------------------------
# Test harness
# ----------------------------------------------------------------------------------
def init_params(key):
    k1, k2, k3, k4, k5, k6 = jax.random.split(key, 6)
    bound = 1.0 / jnp.sqrt(D)                                # PyTorch nn.Linear default bound
    return {
        "w1": jax.random.uniform(k1, (D, D), jnp.float32, -bound, bound),
        "b1": jax.random.uniform(k2, (D,), jnp.float32, -bound, bound),
        # non-default BN affine params so the gamma/beta folding path is exercised
        "gamma": 1.0 + 0.1 * jax.random.normal(k5, (D,), jnp.float32),
        "beta": 0.1 * jax.random.normal(k6, (D,), jnp.float32),
        "w2": jax.random.uniform(k3, (D, D), jnp.float32, -bound, bound),
        "b2": jax.random.uniform(k4, (D,), jnp.float32, -bound, bound),
    }


def _reference(x, p):
    h = x @ p["w1"].T + p["b1"]
    mean = h.mean(axis=0, keepdims=True)
    var = ((h - mean) ** 2).mean(axis=0, keepdims=True)      # biased, training-mode BN
    z = (h - mean) / jnp.sqrt(var + BN_EPS) * p["gamma"] + p["beta"]
    return z @ p["w2"].T + p["b2"]


if __name__ == "__main__":
    key = jax.random.PRNGKey(0)
    kx, kp = jax.random.split(key)
    B = 128                                                  # small shape, multiple of 32
    x = jax.random.normal(kx, (B, D), jnp.float32)
    params = init_params(kp)
    ref = _reference(x, params)

    fwd = jax.jit(model_forward, static_argnames=("force_tiled",))

    out_fused = jax.block_until_ready(fwd(x, params))                    # fused path
    out_tiled = jax.block_until_ready(fwd(x, params, force_tiled=True))  # tiled fallback

    assert out_fused.shape == (B, D)
    assert jnp.allclose(out_fused, ref, atol=1e-3, rtol=1e-3), (out_fused, ref)
    assert jnp.allclose(out_tiled, ref, atol=1e-3, rtol=1e-3), (out_tiled, ref)
    print("KERNEL_OK")
</pallas_src>

<mosaic_0001>
module attributes {stable_mosaic.version = 11 : i64} {
  func.func @_fused_kernel(%arg0: memref<4x128xf32, #tpu.memory_space<vmem>>, %arg1: memref<7x128xf32, #tpu.memory_space<vmem>>, %arg2: memref<7x128xf32, #tpu.memory_space<vmem>>, %arg3: memref<1x128xf32, #tpu.memory_space<vmem>>, %arg4: memref<4x128xf32, #tpu.memory_space<vmem>>) attributes {dimension_semantics = [], scalar_prefetch = 0 : i64, scratch_operands = 0 : i64, tpu.core_type = #tpu.core_type<tc>} {
    %c0 = arith.constant 0 : index
    %c0_0 = arith.constant 0 : index
    %0 = vector.load %arg0[%c0, %c0_0] : memref<4x128xf32, #tpu.memory_space<vmem>>, vector<4x128xf32>
    %c0_1 = arith.constant 0 : index
    %c0_2 = arith.constant 0 : index
    %1 = vector.load %arg1[%c0_1, %c0_2] : memref<7x128xf32, #tpu.memory_space<vmem>>, vector<7x128xf32>
    %c0_3 = arith.constant 0 : index
    %c0_4 = arith.constant 0 : index
    %2 = vector.load %arg2[%c0_3, %c0_4] : memref<7x128xf32, #tpu.memory_space<vmem>>, vector<7x128xf32>
    %c0_5 = arith.constant 0 : index
    %c0_6 = arith.constant 0 : index
    %3 = vector.load %arg3[%c0_5, %c0_6] : memref<1x128xf32, #tpu.memory_space<vmem>>, vector<1x128xf32>
    %4 = tpu.iota {dimensions = array<i32: 0>} : vector<4x128xi32>
    %c0_i32 = arith.constant 0 : i32
    %5 = vector.broadcast %c0_i32 : i32 to vector<4x128xi32>
    %6 = arith.addi %4, %5 : vector<4x128xi32>
    %7 = tpu.iota {dimensions = array<i32: 1>} : vector<4x128xi32>
    %c128_i32 = arith.constant 128 : i32
    %8 = vector.broadcast %c128_i32 : i32 to vector<4x128xi32>
    %9 = arith.muli %6, %8 : vector<4x128xi32>
    %10 = arith.addi %9, %7 : vector<4x128xi32>
    %c512_i32 = arith.constant 512 : i32
    %11 = vector.broadcast %c512_i32 : i32 to vector<4x128xi32>
    %12 = arith.cmpi slt, %10, %11 : vector<4x128xi32>
    %cst = arith.constant 0.000000e+00 : f32
    %13 = vector.broadcast %cst : f32 to vector<4x128xf32>
    %14 = arith.select %12, %0, %13 : vector<4x128xi1>, vector<4x128xf32>
    %cst_7 = arith.constant dense<0.000000e+00> : vector<128xf32>
    %15 = vector.multi_reduction <add>, %14, %cst_7 [0] : vector<4x128xf32> to vector<128xf32>
    %16 = vector.shape_cast %15 : vector<128xf32> to vector<1x128xf32>
    %c4_i32 = arith.constant 4 : i32
    %17 = tpu.dynamic_rotate %16 by %c4_i32 dim 1 : vector<1x128xf32>, i32 -> vector<1x128xf32>
    %18 = arith.addf %16, %17 : vector<1x128xf32>
    %c8_i32 = arith.constant 8 : i32
    %19 = tpu.dynamic_rotate %18 by %c8_i32 dim 1 : vector<1x128xf32>, i32 -> vector<1x128xf32>
    %20 = arith.addf %18, %19 : vector<1x128xf32>
    %c16_i32 = arith.constant 16 : i32
    %21 = tpu.dynamic_rotate %20 by %c16_i32 dim 1 : vector<1x128xf32>, i32 -> vector<1x128xf32>
    %22 = arith.addf %20, %21 : vector<1x128xf32>
    %c32_i32 = arith.constant 32 : i32
    %23 = tpu.dynamic_rotate %22 by %c32_i32 dim 1 : vector<1x128xf32>, i32 -> vector<1x128xf32>
    %24 = arith.addf %22, %23 : vector<1x128xf32>
    %c64_i32 = arith.constant 64 : i32
    %25 = tpu.dynamic_rotate %24 by %c64_i32 dim 1 : vector<1x128xf32>, i32 -> vector<1x128xf32>
    %26 = arith.addf %24, %25 : vector<1x128xf32>
    %cst_8 = arith.constant 7.812500e-03 : f32
    %27 = vector.broadcast %cst_8 : f32 to vector<1x128xf32>
    %28 = arith.mulf %26, %27 : vector<1x128xf32>
    %29 = vector.broadcast %28 : vector<1x128xf32> to vector<4x128xf32>
    %30 = arith.subf %14, %29 : vector<4x128xf32>
    %cst_9 = arith.constant 0.000000e+00 : f32
    %31 = vector.broadcast %cst_9 : f32 to vector<4x128xf32>
    %32 = arith.select %12, %30, %31 : vector<4x128xi1>, vector<4x128xf32>
    %33 = vector.extract_strided_slice %1 {offsets = [3, 0], sizes = [1, 128], strides = [1, 1]} : vector<7x128xf32> to vector<1x128xf32>
    %34 = vector.broadcast %33 : vector<1x128xf32> to vector<4x128xf32>
    %35 = arith.mulf %34, %32 : vector<4x128xf32>
    %36 = vector.extract_strided_slice %1 {offsets = [0, 0], sizes = [1, 128], strides = [1, 1]} : vector<7x128xf32> to vector<1x128xf32>
    %c3_i32 = arith.constant 3 : i32
    %37 = tpu.dynamic_rotate %32 by %c3_i32 dim 1 : vector<4x128xf32>, i32 -> vector<4x128xf32>
    %38 = vector.broadcast %36 : vector<1x128xf32> to vector<4x128xf32>
    %39 = arith.mulf %38, %37 : vector<4x128xf32>
    %40 = arith.addf %35, %39 : vector<4x128xf32>
    %41 = vector.extract_strided_slice %1 {offsets = [1, 0], sizes = [1, 128], strides = [1, 1]} : vector<7x128xf32> to vector<1x128xf32>
    %c2_i32 = arith.constant 2 : i32
    %42 = tpu.dynamic_rotate %32 by %c2_i32 dim 1 : vector<4x128xf32>, i32 -> vector<4x128xf32>
    %43 = vector.broadcast %41 : vector<1x128xf32> to vector<4x128xf32>
    %44 = arith.mulf %43, %42 : vector<4x128xf32>
    %45 = arith.addf %40, %44 : vector<4x128xf32>
    %46 = vector.extract_strided_slice %1 {offsets = [2, 0], sizes = [1, 128], strides = [1, 1]} : vector<7x128xf32> to vector<1x128xf32>
    %c1_i32 = arith.constant 1 : i32
    %47 = tpu.dynamic_rotate %32 by %c1_i32 dim 1 : vector<4x128xf32>, i32 -> vector<4x128xf32>
    %48 = vector.broadcast %46 : vector<1x128xf32> to vector<4x128xf32>
    %49 = arith.mulf %48, %47 : vector<4x128xf32>
    %50 = arith.addf %45, %49 : vector<4x128xf32>
    %51 = vector.extract_strided_slice %1 {offsets = [4, 0], sizes = [1, 128], strides = [1, 1]} : vector<7x128xf32> to vector<1x128xf32>
    %c127_i32 = arith.constant 127 : i32
    %52 = tpu.dynamic_rotate %32 by %c127_i32 dim 1 : vector<4x128xf32>, i32 -> vector<4x128xf32>
    %53 = vector.broadcast %51 : vector<1x128xf32> to vector<4x128xf32>
    %54 = arith.mulf %53, %52 : vector<4x128xf32>
    %55 = arith.addf %50, %54 : vector<4x128xf32>
    %56 = vector.extract_strided_slice %1 {offsets = [5, 0], sizes = [1, 128], strides = [1, 1]} : vector<7x128xf32> to vector<1x128xf32>
    %c126_i32 = arith.constant 126 : i32
    %57 = tpu.dynamic_rotate %32 by %c126_i32 dim 1 : vector<4x128xf32>, i32 -> vector<4x128xf32>
    %58 = vector.broadcast %56 : vector<1x128xf32> to vector<4x128xf32>
    %59 = arith.mulf %58, %57 : vector<4x128xf32>
    %60 = arith.addf %55, %59 : vector<4x128xf32>
    %61 = vector.extract_strided_slice %1 {offsets = [6, 0], sizes = [1, 128], strides = [1, 1]} : vector<7x128xf32> to vector<1x128xf32>
    %c125_i32 = arith.constant 125 : i32
    %62 = tpu.dynamic_rotate %32 by %c125_i32 dim 1 : vector<4x128xf32>, i32 -> vector<4x128xf32>
    %63 = vector.broadcast %61 : vector<1x128xf32> to vector<4x128xf32>
    %64 = arith.mulf %63, %62 : vector<4x128xf32>
    %65 = arith.addf %60, %64 : vector<4x128xf32>
    %66 = arith.mulf %65, %65 : vector<4x128xf32>
    %cst_10 = arith.constant dense<0.000000e+00> : vector<128xf32>
    %67 = vector.multi_reduction <add>, %66, %cst_10 [0] : vector<4x128xf32> to vector<128xf32>
    %68 = vector.shape_cast %67 : vector<128xf32> to vector<1x128xf32>
    %c4_i32_11 = arith.constant 4 : i32
    %69 = tpu.dynamic_rotate %68 by %c4_i32_11 dim 1 : vector<1x128xf32>, i32 -> vector<1x128xf32>
    %70 = arith.addf %68, %69 : vector<1x128xf32>
    %c8_i32_12 = arith.constant 8 : i32
    %71 = tpu.dynamic_rotate %70 by %c8_i32_12 dim 1 : vector<1x128xf32>, i32 -> vector<1x128xf32>
    %72 = arith.addf %70, %71 : vector<1x128xf32>
    %c16_i32_13 = arith.constant 16 : i32
    %73 = tpu.dynamic_rotate %72 by %c16_i32_13 dim 1 : vector<1x128xf32>, i32 -> vector<1x128xf32>
    %74 = arith.addf %72, %73 : vector<1x128xf32>
    %c32_i32_14 = arith.constant 32 : i32
    %75 = tpu.dynamic_rotate %74 by %c32_i32_14 dim 1 : vector<1x128xf32>, i32 -> vector<1x128xf32>
    %76 = arith.addf %74, %75 : vector<1x128xf32>
    %c64_i32_15 = arith.constant 64 : i32
    %77 = tpu.dynamic_rotate %76 by %c64_i32_15 dim 1 : vector<1x128xf32>, i32 -> vector<1x128xf32>
    %78 = arith.addf %76, %77 : vector<1x128xf32>
    %cst_16 = arith.constant 7.812500e-03 : f32
    %79 = vector.broadcast %cst_16 : f32 to vector<1x128xf32>
    %80 = arith.mulf %78, %79 : vector<1x128xf32>
    %cst_17 = arith.constant 9.99999974E-6 : f32
    %81 = vector.broadcast %cst_17 : f32 to vector<1x128xf32>
    %82 = arith.addf %80, %81 : vector<1x128xf32>
    %83 = math.rsqrt %82 : vector<1x128xf32>
    %84 = vector.broadcast %83 : vector<1x128xf32> to vector<4x128xf32>
    %85 = arith.mulf %65, %84 : vector<4x128xf32>
    %86 = vector.extract_strided_slice %2 {offsets = [3, 0], sizes = [1, 128], strides = [1, 1]} : vector<7x128xf32> to vector<1x128xf32>
    %87 = vector.broadcast %86 : vector<1x128xf32> to vector<4x128xf32>
    %88 = arith.mulf %87, %85 : vector<4x128xf32>
    %89 = vector.extract_strided_slice %2 {offsets = [0, 0], sizes = [1, 128], strides = [1, 1]} : vector<7x128xf32> to vector<1x128xf32>
    %c3_i32_18 = arith.constant 3 : i32
    %90 = tpu.dynamic_rotate %85 by %c3_i32_18 dim 1 : vector<4x128xf32>, i32 -> vector<4x128xf32>
    %91 = vector.broadcast %89 : vector<1x128xf32> to vector<4x128xf32>
    %92 = arith.mulf %91, %90 : vector<4x128xf32>
    %93 = arith.addf %88, %92 : vector<4x128xf32>
    %94 = vector.extract_strided_slice %2 {offsets = [1, 0], sizes = [1, 128], strides = [1, 1]} : vector<7x128xf32> to vector<1x128xf32>
    %c2_i32_19 = arith.constant 2 : i32
    %95 = tpu.dynamic_rotate %85 by %c2_i32_19 dim 1 : vector<4x128xf32>, i32 -> vector<4x128xf32>
    %96 = vector.broadcast %94 : vector<1x128xf32> to vector<4x128xf32>
    %97 = arith.mulf %96, %95 : vector<4x128xf32>
    %98 = arith.addf %93, %97 : vector<4x128xf32>
    %99 = vector.extract_strided_slice %2 {offsets = [2, 0], sizes = [1, 128], strides = [1, 1]} : vector<7x128xf32> to vector<1x128xf32>
    %c1_i32_20 = arith.constant 1 : i32
    %100 = tpu.dynamic_rotate %85 by %c1_i32_20 dim 1 : vector<4x128xf32>, i32 -> vector<4x128xf32>
    %101 = vector.broadcast %99 : vector<1x128xf32> to vector<4x128xf32>
    %102 = arith.mulf %101, %100 : vector<4x128xf32>
    %103 = arith.addf %98, %102 : vector<4x128xf32>
    %104 = vector.extract_strided_slice %2 {offsets = [4, 0], sizes = [1, 128], strides = [1, 1]} : vector<7x128xf32> to vector<1x128xf32>
    %c127_i32_21 = arith.constant 127 : i32
    %105 = tpu.dynamic_rotate %85 by %c127_i32_21 dim 1 : vector<4x128xf32>, i32 -> vector<4x128xf32>
    %106 = vector.broadcast %104 : vector<1x128xf32> to vector<4x128xf32>
    %107 = arith.mulf %106, %105 : vector<4x128xf32>
    %108 = arith.addf %103, %107 : vector<4x128xf32>
    %109 = vector.extract_strided_slice %2 {offsets = [5, 0], sizes = [1, 128], strides = [1, 1]} : vector<7x128xf32> to vector<1x128xf32>
    %c126_i32_22 = arith.constant 126 : i32
    %110 = tpu.dynamic_rotate %85 by %c126_i32_22 dim 1 : vector<4x128xf32>, i32 -> vector<4x128xf32>
    %111 = vector.broadcast %109 : vector<1x128xf32> to vector<4x128xf32>
    %112 = arith.mulf %111, %110 : vector<4x128xf32>
    %113 = arith.addf %108, %112 : vector<4x128xf32>
    %114 = vector.extract_strided_slice %2 {offsets = [6, 0], sizes = [1, 128], strides = [1, 1]} : vector<7x128xf32> to vector<1x128xf32>
    %c125_i32_23 = arith.constant 125 : i32
    %115 = tpu.dynamic_rotate %85 by %c125_i32_23 dim 1 : vector<4x128xf32>, i32 -> vector<4x128xf32>
    %116 = vector.broadcast %114 : vector<1x128xf32> to vector<4x128xf32>
    %117 = arith.mulf %116, %115 : vector<4x128xf32>
    %118 = arith.addf %113, %117 : vector<4x128xf32>
    %119 = vector.broadcast %3 : vector<1x128xf32> to vector<4x128xf32>
    %120 = arith.addf %118, %119 : vector<4x128xf32>
    %c0_24 = arith.constant 0 : index
    %c0_25 = arith.constant 0 : index
    %121 = vector.load %arg4[%c0_24, %c0_25] : memref<4x128xf32, #tpu.memory_space<vmem>>, vector<4x128xf32>
    tpu.vector_store %arg4[%c0_24, %c0_25], %120 {strides = array<i32>} : memref<4x128xf32, #tpu.memory_space<vmem>>, vector<4x128xf32>,
    return
  }
}

</mosaic_0001>

<llo_original>
// kernel: tile.8
$region0: #{tile.8}
  #allocation0 [shape = 's32[1]{0}', space=sflag, size = 0x4, scoped, tag = 'scoped memory for tile.8']
  %s0 = inlined_call_operand.vmem [shape: f32[4], index: 0, kind: input, shape index: {}]
  %s1 = inlined_call_operand.vmem [shape: f32[32,4], index: 1, kind: output, shape index: {}]
  // Predicated region
  $region2: #{tile.8} parent=0 // pred_check
    _
  $region3: #{tile.8} parent=0 // pred_check_branch
    %3 = sbr.rel (0) target = $region5
  $region4: #{tile.8} parent=0 // pred_region
    _
  $region5: #{tile.8} parent=0 // pred_fallthru
    _
  %v4 = vld [vmem:[%s0] ss:$0 sm:$0xff]
  %5 = vst [vmem:[%s1] sm:$0xff] %v4
  %s6 = scalar_lea.vmem %s1, 8
  %7 = vst [vmem:[%s6] sm:$0xff] %v4
  %s8 = scalar_lea.vmem %s1, 16
  %9 = vst [vmem:[%s8] sm:$0xff] %v4
  %s10 = scalar_lea.vmem %s1, 24
  %11 = vst [vmem:[%s10] sm:$0xff] %v4

// kernel: tile.9
$region0: #{tile.9}
  %s0 = inlined_call_operand.vmem [shape: f32[32,4], index: 0, kind: input, shape index: {}]
  %s1 = inlined_call_operand.vmem [shape: f32[1,128], index: 1, kind: output, shape index: {}]
  $region1: #{tile.9} parent=0
    #allocation0 [shape = 'u8[4096]{0}', space=vmem, size = 0x1000, scoped, tag = 'scoped mem for output reshape']
    %v2 = vld [vmem:[%s0] sm:$0x1]
    %vm3 = vcmask 31744
    %4 = vst.msk [vmem:[#allocation0] sm:$0x1] %vm3, %v2
    %s5 = scalar_lea.vmem %s0, 31
    %v6 = vld [vmem:[%s5] sm:$0x1]
    %7 = vrot.lane.b32.xlu0 %v6, 124
    %v8 = vpop.permute.xlu0 %7
    %vm9 = vcmask 1048544
    %10 = vst.msk [vmem:[#allocation0] sm:$0x1] %vm9, %v8
    %s11 = scalar_lea.vmem %s0, 30
    %v12 = vld [vmem:[%s11] sm:$0x1]
    %13 = vrot.lane.b32.xlu0 %v12, 120
    %v14 = vpop.permute.xlu0 %13
    %vm15 = vcmask 1015744
    %16 = vst.msk [vmem:[#allocation0] sm:$0x1] %vm15, %v14
    %s17 = scalar_lea.vmem %s0, 29
    %v18 = vld [vmem:[%s17] sm:$0x1]
    %19 = vrot.lane.b32.xlu0 %v18, 116
    %v20 = vpop.permute.xlu0 %19
    %vm21 = vcmask 982944
    %22 = vst.msk [vmem:[#allocation0] sm:$0x1] %vm21, %v20
    %s23 = scalar_lea.vmem %s0, 28
    %v24 = vld [vmem:[%s23] sm:$0x1]
    %25 = vrot.lane.b32.xlu0 %v24, 112
    %v26 = vpop.permute.xlu0 %25
    %vm27 = vcmask 950144
    %28 = vst.msk [vmem:[#allocation0] sm:$0x1] %vm27, %v26
    %s29 = scalar_lea.vmem %s0, 27
    %v30 = vld [vmem:[%s29] sm:$0x1]
    %31 = vrot.lane.b32.xlu0 %v30, 108
    %v32 = vpop.permute.xlu0 %31
    %vm33 = vcmask 917344
    %34 = vst.msk [vmem:[#allocation0] sm:$0x1] %vm33, %v32
    %s35 = scalar_lea.vmem %s0, 26
    %v36 = vld [vmem:[%s35] sm:$0x1]
    %37 = vrot.lane.b32.xlu0 %v36, 104
    %v38 = vpop.permute.xlu0 %37
    %vm39 = vcmask 884544
    %40 = vst.msk [vmem:[#allocation0] sm:$0x1] %vm39, %v38
    %s41 = scalar_lea.vmem %s0, 25
    %v42 = vld [vmem:[%s41] sm:$0x1]
    %43 = vrot.lane.b32.xlu0 %v42, 100
    %v44 = vpop.permute.xlu0 %43
    %vm45 = vcmask 851744
    %46 = vst.msk [vmem:[#allocation0] sm:$0x1] %vm45, %v44
    %s47 = scalar_lea.vmem %s0, 24
    %v48 = vld [vmem:[%s47] sm:$0x1]
    %49 = vrot.lane.b32.xlu0 %v48, 96
    %v50 = vpop.permute.xlu0 %49
    %vm51 = vcmask 818944
    %52 = vst.msk [vmem:[#allocation0] sm:$0x1] %vm51, %v50
    %s53 = scalar_lea.vmem %s0, 23
    %v54 = vld [vmem:[%s53] sm:$0x1]
    %55 = vrot.lane.b32.xlu0 %v54, 92
    %v56 = vpop.permute.xlu0 %55
    %vm57 = vcmask 786144
    %58 = vst.msk [vmem:[#allocation0] sm:$0x1] %vm57, %v56
    %s59 = scalar_lea.vmem %s0, 22
    %v60 = vld [vmem:[%s59] sm:$0x1]
    %61 = vrot.lane.b32.xlu0 %v60, 88
    %v62 = vpop.permute.xlu0 %61
    %vm63 = vcmask 753344
    %64 = vst.msk [vmem:[#allocation0] sm:$0x1] %vm63, %v62
    %s65 = scalar_lea.vmem %s0, 21
    %v66 = vld [vmem:[%s65] sm:$0x1]
    %67 = vrot.lane.b32.xlu0 %v66, 84
    %v68 = vpop.permute.xlu0 %67
    %vm69 = vcmask 720544
    %70 = vst.msk [vmem:[#allocation0] sm:$0x1] %vm69, %v68
    %s71 = scalar_lea.vmem %s0, 20
    %v72 = vld [vmem:[%s71] sm:$0x1]
    %73 = vrot.lane.b32.xlu0 %v72, 80
    %v74 = vpop.permute.xlu0 %73
    %vm75 = vcmask 687744
    %76 = vst.msk [vmem:[#allocation0] sm:$0x1] %vm75, %v74
    %s77 = scalar_lea.vmem %s0, 19
    %v78 = vld [vmem:[%s77] sm:$0x1]
    %79 = vrot.lane.b32.xlu0 %v78, 76
    %v80 = vpop.permute.xlu0 %79
    %vm81 = vcmask 654944
    %82 = vst.msk [vmem:[#allocation0] sm:$0x1] %vm81, %v80
    %s83 = scalar_lea.vmem %s0, 18
    %v84 = vld [vmem:[%s83] sm:$0x1]
    %85 = vrot.lane.b32.xlu0 %v84, 72
    %v86 = vpop.permute.xlu0 %85
    %vm87 = vcmask 622144
    %88 = vst.msk [vmem:[#allocation0] sm:$0x1] %vm87, %v86
    %s89 = scalar_lea.vmem %s0, 17
    %v90 = vld [vmem:[%s89] sm:$0x1]
    %91 = vrot.lane.b32.xlu0 %v90, 68
    %v92 = vpop.permute.xlu0 %91
    %vm93 = vcmask 589344
    %94 = vst.msk [vmem:[#allocation0] sm:$0x1] %vm93, %v92
    %s95 = scalar_lea.vmem %s0, 16
    %v96 = vld [vmem:[%s95] sm:$0x1]
    %97 = vrot.lane.b32.xlu0 %v96, 64
    %v98 = vpop.permute.xlu0 %97
    %vm99 = vcmask 556544
    %100 = vst.msk [vmem:[#allocation0] sm:$0x1] %vm99, %v98
    %s101 = scalar_lea.vmem %s0, 15
    %v102 = vld [vmem:[%s101] sm:$0x1]
    %103 = vrot.lane.b32.xlu0 %v102, 60
    %v104 = vpop.permute.xlu0 %103
    %vm105 = vcmask 523744
    %106 = vst.msk [vmem:[#allocation0] sm:$0x1] %vm105, %v104
    %s107 = scalar_lea.vmem %s0, 14
    %v108 = vld [vmem:[%s107] sm:$0x1]
    %109 = vrot.lane.b32.xlu0 %v108, 56
    %v110 = vpop.permute.xlu0 %109
    %vm111 = vcmask 490944
    %112 = vst.msk [vmem:[#allocation0] sm:$0x1] %vm111, %v110
    %s113 = scalar_lea.vmem %s0, 13
    %v114 = vld [vmem:[%s113] sm:$0x1]
    %115 = vrot.lane.b32.xlu0 %v114, 52
    %v116 = vpop.permute.xlu0 %115
    %vm117 = vcmask 458144
    %118 = vst.msk [vmem:[#allocation0] sm:$0x1] %vm117, %v116
    %s119 = scalar_lea.vmem %s0, 12
    %v120 = vld [vmem:[%s119] sm:$0x1]
    %121 = vrot.lane.b32.xlu0 %v120, 48
    %v122 = vpop.permute.xlu0 %121
    %vm123 = vcmask 425344
    %124 = vst.msk [vmem:[#allocation0] sm:$0x1] %vm123, %v122
    %s125 = scalar_lea.vmem %s0, 11
    %v126 = vld [vmem:[%s125] sm:$0x1]
    %127 = vrot.lane.b32.xlu0 %v126, 44
    %v128 = vpop.permute.xlu0 %127
    %vm129 = vcmask 392544
    %130 = vst.msk [vmem:[#allocation0] sm:$0x1] %vm129, %v128
    %s131 = scalar_lea.vmem %s0, 10
    %v132 = vld [vmem:[%s131] sm:$0x1]
    %133 = vrot.lane.b32.xlu0 %v132, 40
    %v134 = vpop.permute.xlu0 %133
    %vm135 = vcmask 359744
    %136 = vst.msk [vmem:[#allocation0] sm:$0x1] %vm135, %v134
    %s137 = scalar_lea.vmem %s0, 9
    %v138 = vld [vmem:[%s137] sm:$0x1]
    %139 = vrot.lane.b32.xlu0 %v138, 36
    %v140 = vpop.permute.xlu0 %139
    %vm141 = vcmask 326944
    %142 = vst.msk [vmem:[#allocation0] sm:$0x1] %vm141, %v140
    %s143 = scalar_lea.vmem %s0, 8
    %v144 = vld [vmem:[%s143] sm:$0x1]
    %145 = vrot.lane.b32.xlu0 %v144, 32
    %v146 = vpop.permute.xlu0 %145
    %vm147 = vcmask 294144
    %148 = vst.msk [vmem:[#allocation0] sm:$0x1] %vm147, %v146
    %s149 = scalar_lea.vmem %s0, 7
    %v150 = vld [vmem:[%s149] sm:$0x1]
    %151 = vrot.lane.b32.xlu0 %v150, 28
    %v152 = vpop.permute.xlu0 %151
    %vm153 = vcmask 261344
    %154 = vst.msk [vmem:[#allocation0] sm:$0x1] %vm153, %v152
    %s155 = scalar_lea.vmem %s0, 6
    %v156 = vld [vmem:[%s155] sm:$0x1]
    %157 = vrot.lane.b32.xlu0 %v156, 24
    %v158 = vpop.permute.xlu0 %157
    %vm159 = vcmask 228544
    %160 = vst.msk [vmem:[#allocation0] sm:$0x1] %vm159, %v158
    %s161 = scalar_lea.vmem %s0, 5
    %v162 = vld [vmem:[%s161] sm:$0x1]
    %163 = vrot.lane.b32.xlu0 %v162, 20
    %v164 = vpop.permute.xlu0 %163
    %vm165 = vcmask 195744
    %166 = vst.msk [vmem:[#allocation0] sm:$0x1] %vm165, %v164
    %s167 = scalar_lea.vmem %s0, 4
    %v168 = vld [vmem:[%s167] sm:$0x1]
    %169 = vrot.lane.b32.xlu0 %v168, 16
    %v170 = vpop.permute.xlu0 %169
    %vm171 = vcmask 162944
    %172 = vst.msk [vmem:[#allocation0] sm:$0x1] %vm171, %v170
    %s173 = scalar_lea.vmem %s0, 3
    %v174 = vld [vmem:[%s173] sm:$0x1]
    %175 = vrot.lane.b32.xlu0 %v174, 12
    %v176 = vpop.permute.xlu0 %175
    %vm177 = vcmask 130144
    %178 = vst.msk [vmem:[#allocation0] sm:$0x1] %vm177, %v176
    %s179 = scalar_lea.vmem %s0, 2
    %v180 = vld [vmem:[%s179] sm:$0x1]
    %181 = vrot.lane.b32.xlu0 %v180, 8
    %v182 = vpop.permute.xlu0 %181
    %vm183 = vcmask 97344
    %184 = vst.msk [vmem:[#allocation0] sm:$0x1] %vm183, %v182
    %s185 = scalar_lea.vmem %s0, 1
    %v186 = vld [vmem:[%s185] sm:$0x1]
    %187 = vrot.lane.b32.xlu0 %v186, 4
    %v188 = vpop.permute.xlu0 %187
    %vm189 = vcmask 64544
    %190 = vst.msk [vmem:[#allocation0] sm:$0x1] %vm189, %v188
    %s192 = sshll.u32 1, 1
    %s193 = ssub.s32 %s192, 1
    %v195 = vld [vmem:[#allocation0] sm:%s193]
    %s196 = sshll.u32 1, 1
    %s197 = ssub.s32 %s196, 1
    %198 = vst [vmem:[%s1] sm:%s197] %v195

// kernel: model_forward.1
$region0: #{model_forward.1}
  #allocation0 [shape = 'u32[]', space=smem, size = 0x4, offset = 0x4, fixed_abs, tag = 'smem constant byte address 0x4 - core index']
  #allocation1 [shape = 'u32[144,128]{1,0:T(1,128)}', space=vmem, size = 0x12000, scoped, tag = 'internal scratch']
  %s0 = inlined_call_operand.vmem [shape: f32[4,128], index: 0, kind: input, shape index: {}]
  %s1 = inlined_call_operand.vmem [shape: f32[7,128], index: 1, kind: input, shape index: {}]
  %s2 = inlined_call_operand.vmem [shape: f32[7,128], index: 2, kind: input, shape index: {}]
  %s3 = inlined_call_operand.vmem [shape: f32[1,128], index: 3, kind: input, shape index: {}]
  %s4 = inlined_call_operand.vmem [shape: f32[4,128], index: 4, kind: output, shape index: {}]
  %s5 = sld [smem:[#allocation0]]
  $region26: #{model_forward.1} parent=0
    _
  %s7 = ssub.s32 1, %s5
  %s8 = scalar_select 0, %s7, %s5
  // Predicated region
  $region2: #{model_forward.1} parent=0 // pred_check
    _
  $region3: #{model_forward.1} parent=0 // pred_check_branch
    %10 = sbr.rel (0) target = $region5
  $region4: #{model_forward.1} parent=0 // pred_region
    _
  $region5: #{model_forward.1} parent=0 // pred_fallthru
    _
  // Predicated region
  $region6: #{model_forward.1} parent=0 // pred_check
    _
  $region7: #{model_forward.1} parent=0 // pred_check_branch
    %12 = sbr.rel (0) target = $region9
  $region8: #{model_forward.1} parent=0 // pred_region
    _
  $region9: #{model_forward.1} parent=0 // pred_fallthru
    _
  // Predicated region
  $region10: #{model_forward.1} parent=0 // pred_check
    _
  $region11: #{model_forward.1} parent=0 // pred_check_branch
    %14 = sbr.rel (0) target = $region13
  $region12: #{model_forward.1} parent=0 // pred_region
    _
  $region13: #{model_forward.1} parent=0 // pred_fallthru
    _
  // Predicated region
  $region14: #{model_forward.1} parent=0 // pred_check
    _
  $region15: #{model_forward.1} parent=0 // pred_check_branch
    %16 = sbr.rel (0) target = $region17
  $region16: #{model_forward.1} parent=0 // pred_region
    _
  $region17: #{model_forward.1} parent=0 // pred_fallthru
    _
  %v17 = vld [vmem:[%s0] sm:$0xf]
  %v18 = vld [vmem:[%s1] sm:$0x7f]
  %v19 = vld [vmem:[%s2] sm:$0x7f]
  %v20 = vld [vmem:[%s3] sm:$0x1]
  %v21 = vlaneseq
  %v22 = vshrl.u32 %v21, 7
  %v23 = vlaneseq
  %v24 = vand.u32 %v23, 127
  %v25 = vmul.u32 %v22, 128
  %v26 = vadd.s32 %v25, %v24
  %vm27 = vcmp.lt.s32.totalorder %v26, 512
  %v28 = vsel %vm27, %v17, 0.0
  %vm29 = vcmask 1043456
  %v30 = vsel %vm29, %v28, 0.0
  %v31 = vrot.slane %v30, 4
  %v32 = vadd.f32 %v30, %v31
  %v33 = vrot.slane %v32, 2
  %v34 = vadd.f32 %v32, %v33
  %v35 = vrot.slane %v34, 1
  %v36 = vadd.f32 %v34, %v35
  %37 = vrot.lane.b32.xlu0 %v36, 4
  %v38 = vpop.permute.xlu0 %37
  %v39 = vadd.f32 %v36, %v38
  %40 = vrot.lane.b32.xlu0 %v39, 8
  %v41 = vpop.permute.xlu0 %40
  %v42 = vadd.f32 %v39, %v41
  %43 = vrot.lane.b32.xlu0 %v42, 16
  %v44 = vpop.permute.xlu0 %43
  %v45 = vadd.f32 %v42, %v44
  %46 = vrot.lane.b32.xlu0 %v45, 32
  %v47 = vpop.permute.xlu0 %46
  %v48 = vadd.f32 %v45, %v47
  %49 = vrot.lane.b32.xlu0 %v48, 64
  %v50 = vpop.permute.xlu0 %49
  %v51 = vadd.f32 %v48, %v50
  %v52 = vmul.f32 %v51, 0.0078125
  %v53 = vlaneseq
  %v54 = vshrl.u32 %v53, 7
  %v55 = vsub.s32 0, %v54
  %v56 = vrot.slane %v52, %v55
  %v57 = vsub.f32 %v28, %v56
  %v58 = vsel %vm27, %v57, 0.0
  %v59 = vlaneseq
  %v60 = vshrl.u32 %v59, 7
  %v61 = vsub.s32 3, %v60
  %v62 = vrot.slane %v18, %v61
  %v63 = vmul.f32 %v62, %v58
  %64 = vrot.lane.b32.xlu0 %v58, 3
  %v65 = vpop.permute.xlu0 %64
  %v66 = vlaneseq
  %v67 = vshrl.u32 %v66, 7
  %v68 = vsub.s32 0, %v67
  %v69 = vrot.slane %v18, %v68
  %v70 = vmul.f32 %v69, %v65
  %v71 = vadd.f32 %v63, %v70
  %72 = vrot.lane.b32.xlu0 %v58, 2
  %v73 = vpop.permute.xlu0 %72
  %v74 = vlaneseq
  %v75 = vshrl.u32 %v74, 7
  %v76 = vsub.s32 1, %v75
  %v77 = vrot.slane %v18, %v76
  %v78 = vmul.f32 %v77, %v73
  %v79 = vadd.f32 %v71, %v78
  %80 = vrot.lane.b32.xlu0 %v58, 1
  %v81 = vpop.permute.xlu0 %80
  %v82 = vlaneseq
  %v83 = vshrl.u32 %v82, 7
  %v84 = vsub.s32 2, %v83
  %v85 = vrot.slane %v18, %v84
  %v86 = vmul.f32 %v85, %v81
  %v87 = vadd.f32 %v79, %v86
  %88 = vrot.lane.b32.xlu0 %v58, 127
  %v89 = vpop.permute.xlu0 %88
  %v90 = vlaneseq
  %v91 = vshrl.u32 %v90, 7
  %v92 = vsub.s32 4, %v91
  %v93 = vrot.slane %v18, %v92
  %v94 = vmul.f32 %v93, %v89
  %v95 = vadd.f32 %v87, %v94
  %96 = vrot.lane.b32.xlu0 %v58, 126
  %v97 = vpop.permute.xlu0 %96
  %v98 = vlaneseq
  %v99 = vshrl.u32 %v98, 7
  %v100 = vsub.s32 5, %v99
  %v101 = vrot.slane %v18, %v100
  %v102 = vmul.f32 %v101, %v97
  %v103 = vadd.f32 %v95, %v102
  %104 = vrot.lane.b32.xlu0 %v58, 125
  %v105 = vpop.permute.xlu0 %104
  %v106 = vlaneseq
  %v107 = vshrl.u32 %v106, 7
  %v108 = vsub.s32 6, %v107
  %v109 = vrot.slane %v18, %v108
  %v110 = vmul.f32 %v109, %v105
  %v111 = vadd.f32 %v103, %v110
  %v112 = vmul.f32 %v111, %v111
  %v113 = vsel %vm29, %v112, 0.0
  %v114 = vrot.slane %v113, 4
  %v115 = vadd.f32 %v113, %v114
  %v116 = vrot.slane %v115, 2
  %v117 = vadd.f32 %v115, %v116
  %v118 = vrot.slane %v117, 1
  %v119 = vadd.f32 %v117, %v118
  %120 = vrot.lane.b32.xlu0 %v119, 4
  %v121 = vpop.permute.xlu0 %120
  %v122 = vadd.f32 %v119, %v121
  %123 = vrot.lane.b32.xlu0 %v122, 8
  %v124 = vpop.permute.xlu0 %123
  %v125 = vadd.f32 %v122, %v124
  %126 = vrot.lane.b32.xlu0 %v125, 16
  %v127 = vpop.permute.xlu0 %126
  %v128 = vadd.f32 %v125, %v127
  %129 = vrot.lane.b32.xlu0 %v128, 32
  %v130 = vpop.permute.xlu0 %129
  %v131 = vadd.f32 %v128, %v130
  %132 = vrot.lane.b32.xlu0 %v131, 64
  %v133 = vpop.permute.xlu0 %132
  %v134 = vadd.f32 %v131, %v133
  %v135 = vmul.f32 %v134, 0.0078125
  %v136 = vadd.f32 %v135, 1e-05
  %v137 = vrsqrt.pop %v136
  %v138 = vlaneseq
  %v139 = vshrl.u32 %v138, 7
  %v140 = vsub.s32 0, %v139
  %v141 = vrot.slane %v137, %v140
  %v142 = vmul.f32 %v111, %v141
  %v143 = vlaneseq
  %v144 = vshrl.u32 %v143, 7
  %v145 = vsub.s32 3, %v144
  %v146 = vrot.slane %v19, %v145
  %v147 = vmul.f32 %v146, %v142
  %148 = vrot.lane.b32.xlu0 %v142, 3
  %v149 = vpop.permute.xlu0 %148
  %v150 = vlaneseq
  %v151 = vshrl.u32 %v150, 7
  %v152 = vsub.s32 0, %v151
  %v153 = vrot.slane %v19, %v152
  %v154 = vmul.f32 %v153, %v149
  %v155 = vadd.f32 %v147, %v154
  %156 = vrot.lane.b32.xlu0 %v142, 2
  %v157 = vpop.permute.xlu0 %156
  %v158 = vlaneseq
  %v159 = vshrl.u32 %v158, 7
  %v160 = vsub.s32 1, %v159
  %v161 = vrot.slane %v19, %v160
  %v162 = vmul.f32 %v161, %v157
  %v163 = vadd.f32 %v155, %v162
  %164 = vrot.lane.b32.xlu0 %v142, 1
  %v165 = vpop.permute.xlu0 %164
  %v166 = vlaneseq
  %v167 = vshrl.u32 %v166, 7
  %v168 = vsub.s32 2, %v167
  %v169 = vrot.slane %v19, %v168
  %v170 = vmul.f32 %v169, %v165
  %v171 = vadd.f32 %v163, %v170
  %172 = vrot.lane.b32.xlu0 %v142, 127
  %v173 = vpop.permute.xlu0 %172
  %v174 = vlaneseq
  %v175 = vshrl.u32 %v174, 7
  %v176 = vsub.s32 4, %v175
  %v177 = vrot.slane %v19, %v176
  %v178 = vmul.f32 %v177, %v173
  %v179 = vadd.f32 %v171, %v178
  %180 = vrot.lane.b32.xlu0 %v142, 126
  %v181 = vpop.permute.xlu0 %180
  %v182 = vlaneseq
  %v183 = vshrl.u32 %v182, 7
  %v184 = vsub.s32 5, %v183
  %v185 = vrot.slane %v19, %v184
  %v186 = vmul.f32 %v185, %v181
  %v187 = vadd.f32 %v179, %v186
  %188 = vrot.lane.b32.xlu0 %v142, 125
  %v189 = vpop.permute.xlu0 %188
  %v190 = vlaneseq
  %v191 = vshrl.u32 %v190, 7
  %v192 = vsub.s32 6, %v191
  %v193 = vrot.slane %v19, %v192
  %v194 = vmul.f32 %v193, %v189
  %v195 = vadd.f32 %v187, %v194
  %v197 = vlaneseq
  %v198 = vshrl.u32 %v197, 7
  %v199 = vsub.s32 0, %v198
  %v200 = vrot.slane %v20, %v199
  %v202 = vadd.f32 %v195, %v200
  %203 = vst [vmem:[%s4] sm:$0xf] %v202
  // Predicated region
  $region18: #{model_forward.1} parent=0 // pred_check
    _
  $region19: #{model_forward.1} parent=0 // pred_check_branch
    %205 = sbr.rel (0) target = $region21
  $region20: #{model_forward.1} parent=0 // pred_region
    _
  $region21: #{model_forward.1} parent=0 // pred_fallthru
    _
  // Predicated region
  $region22: #{model_forward.1} parent=0 // pred_check
    _
  $region23: #{model_forward.1} parent=0 // pred_check_branch
    %207 = sbr.rel (0) target = $region25
  $region24: #{model_forward.1} parent=0 // pred_region
    _
  $region25: #{model_forward.1} parent=0 // pred_fallthru
    _

</llo_original>
